<compile_context>
chip_gen: v6e
topology: v6e:2x2x1
jax: 0.10.0
libtpu: 0.0.40
codegen_flags: <defaults>
</compile_context>

<pallas_src>
import functools

import jax
import jax.numpy as jnp
from jax.experimental import pallas as pl
from jax.experimental.pallas import tpu as pltpu


def _frame_nce_kernel(ctx_ref, q_ref, o_ref,
                      m_row, s_row, col_scr, diag_scr, gmat,
                      *, num_groups, frames_per_group):
    TG = num_groups            # query groups handled per grid step
    F = frames_per_group       # frames per query group
    TQ = TG * F
    j = pl.program_id(0)
    nb = pl.num_programs(0)
    B = ctx_ref.shape[0]

    @pl.when(j == 0)
    def _init():
        m_row[...] = jnp.full((B, 1), -jnp.inf, dtype=jnp.float32)
        s_row[...] = jnp.zeros((B, 1), dtype=jnp.float32)
        col_scr[...] = jnp.zeros((B, 1), dtype=jnp.float32)
        diag_scr[...] = jnp.zeros((B, 1), dtype=jnp.float32)
        # One-hot group-membership matrix G[c, g] = 1 iff column c belongs to
        # group g.  Built once into VMEM scratch (not rebuilt every grid step).
        c_idx = jax.lax.broadcasted_iota(jnp.int32, (TQ, TG), 0)
        g_idx = jax.lax.broadcasted_iota(jnp.int32, (TQ, TG), 1)
        in_group = (c_idx >= g_idx * F) & (c_idx < (g_idx + 1) * F)
        gmat[...] = in_group.astype(jnp.float32)

    # Scores for this block of query rows: (B, TQ).  Operands stay in their
    # native dtype; f32 accumulation on the MXU; contract D with D directly.
    s_blk = jax.lax.dot_general(
        ctx_ref[...], q_ref[...],
        dimension_numbers=(((1,), (1,)), ((), ())),
        preferred_element_type=jnp.float32)

    # ---- online logsumexp over the "row" direction (all queries) per context.
    blk_max = jnp.max(s_blk, axis=1, keepdims=True)              # (B, 1)
    m_new = jnp.maximum(m_row[...], blk_max)                     # (B, 1)
    e_blk = jnp.exp(s_blk - m_new)                               # single exp pass

    # Per-row per-group sums of e_blk with ONE one-hot MXU matmul (exact f32).
    e_grp = jnp.dot(e_blk, gmat[...],
                    preferred_element_type=jnp.float32,
                    precision=jax.lax.Precision.HIGHEST)         # (B, TG)

    row_blk_sum = jnp.sum(e_grp, axis=1, keepdims=True)          # == sum(e_blk, -1)
    s_row[...] = s_row[...] * jnp.exp(m_row[...] - m_new) + row_blk_sum
    m_row[...] = m_new

    # ---- per-group column / diagonal logsumexps, vectorized over TG groups.
    # L[i, g] = logsumexp_f x[i, j*TG+g, f]   (reuses e_blk via e_grp)
    L = m_new + jnp.log(e_grp)                                   # (B, TG)
    row_ids = jax.lax.broadcasted_iota(jnp.int32, (B, TG), 0)
    grp_ids = jax.lax.broadcasted_iota(jnp.int32, (B, TG), 1) + j * TG
    diag_mask = row_ids == grp_ids                               # (B, TG)

    # Column logsumexp per group = logsumexp over contexts i of L[i, g].
    l_max = jnp.max(L, axis=0, keepdims=True)                    # (1, TG)
    l_max_safe = jnp.where(l_max == -jnp.inf, 0.0, l_max)        # avoid inf-inf
    col_lse = l_max_safe + jnp.log(
        jnp.sum(jnp.exp(L - l_max_safe), axis=0, keepdims=True))  # (1, TG)

    # Scatter this block's TG column / diagonal values into their context rows
    # (one masked select + lane reduce each; other rows contribute exact zeros).
    col_scr[...] = col_scr[...] + jnp.sum(
        jnp.where(diag_mask, col_lse, 0.0), axis=1, keepdims=True)
    diag_scr[...] = diag_scr[...] + jnp.sum(
        jnp.where(diag_mask, L, 0.0), axis=1, keepdims=True)

    # ---- finalize: denominator = logaddexp(row_lse, col_lse); mean reduction.
    @pl.when(j == nb - 1)
    def _finalize():
        row_lse = m_row[...] + jnp.log(s_row[...])               # (B, 1)
        col_all = col_scr[...]
        mx = jnp.maximum(row_lse, col_all)
        denom = mx + jnp.log(jnp.exp(row_lse - mx) + jnp.exp(col_all - mx))
        # Diagonal frames appear in BOTH the row and the column logsumexp; this
        # double count matches the reference's cat((x, x^T)) and must be kept.
        per_sample = denom - diag_scr[...]                       # (B, 1)
        # TODO(synk): reduction=None would return per_sample instead of mean.
        o_ref[...] = (jnp.sum(per_sample, keepdims=True) /
                      jnp.float32(B)).astype(o_ref.dtype)


def _tpu_vmem_capacity_bytes():
    try:
        return int(pltpu.get_tpu_info().vmem_capacity_bytes)
    except Exception:
        return 64 * 1024 * 1024          # conservative (v7x per-core VMEM)


def _choose_groups_per_block(B, F, D, q_itemsize, ctx_itemsize, vmem_budget_bytes):
    """Largest divisor TG of B whose estimated VMEM footprint (double-buffered
    query block + resident contexts + f32 score/exp temporaries + scratch) fits
    the budget, with sublane legality for the queries dtype (8 rows for f32,
    16 for bf16, 32 for int8/fp8).  Mildly prefers MXU-aligned TQ (mult. of 256).
    """
    sub = max(8, 32 // max(1, q_itemsize))

    def footprint(tg):
        tq = tg * F
        q_bytes = 2 * tq * D * q_itemsize            # streamed, double-buffered
        ctx_bytes = 2 * B * D * ctx_itemsize         # resident (pipeline dbuf)
        tmp_bytes = 3 * B * tq * 4                   # s_blk, e_blk (+ slack), f32
        scr_bytes = (4 * B * 128 + tq * max(tg, 128)) * 4
        return q_bytes + ctx_bytes + tmp_bytes + scr_bytes

    legal = [tg for tg in range(1, B + 1)
             if B % tg == 0 and ((tg * F) % sub == 0 or tg == B)]
    fitting = [tg for tg in legal if footprint(tg) <= vmem_budget_bytes]
    if not fitting:
        return legal[0]                              # smallest legal tile
    best = fitting[-1]                               # divisors ascend -> largest
    aligned = [tg for tg in fitting if (tg * F) % 256 == 0]
    if aligned and aligned[-1] * 2 >= best:
        best = aligned[-1]
    return best


def frame_nce_loss(contexts, queries, *, groups_per_block=None):
    """Pallas frame_nce(reduction='mean') for the contexts/queries path.

    contexts: (B, D); queries: (B*F, D). Returns the scalar mean loss (f32).
    """
    # TODO(synk): the precomputed q2ctx_scores input path reuses the same
    # reductions but skips the matmul; not wired up here.
    # TODO(synk): on v7x, split the query-row stream across the 2 TensorCores
    # (leading "parallel" axis + per-core partial accumulators) for ~2x.
    B, D = contexts.shape
    N, Dq = queries.shape
    assert Dq == D and N % B == 0, "queries must be (B*F, D)"
    F = N // B

    vmem_cap = _tpu_vmem_capacity_bytes()
    vmem_limit = int(min(max(vmem_cap // 2, 32 * 1024 * 1024),
                         vmem_cap * 3 // 4,
                         64 * 1024 * 1024))

    q_itemsize = jnp.dtype(queries.dtype).itemsize
    ctx_itemsize = jnp.dtype(contexts.dtype).itemsize
    if groups_per_block is None:
        groups_per_block = _choose_groups_per_block(
            B, F, D, q_itemsize, ctx_itemsize,
            vmem_budget_bytes=int(vmem_limit * 0.8))
    TG = groups_per_block
    assert B % TG == 0, "groups_per_block must divide B"
    TQ = TG * F
    sub = max(8, 32 // max(1, q_itemsize))
    assert (TQ % sub == 0) or (TG == B), (
        f"query tile rows ({TQ}) must be a multiple of {sub} for this dtype")
    nb = B // TG

    kernel = functools.partial(_frame_nce_kernel,
                               num_groups=TG, frames_per_group=F)

    out = pl.pallas_call(
        kernel,
        out_shape=jax.ShapeDtypeStruct((1, 1), jnp.float32),
        grid_spec=pltpu.PrefetchScalarGridSpec(
            num_scalar_prefetch=0,
            grid=(nb,),
            in_specs=[
                # TODO(synk): contexts never changes; a single-buffer
                # pipeline_mode would reclaim one B*D copy of VMEM.
                pl.BlockSpec((B, D), lambda j: (0, 0)),    # contexts: resident
                pl.BlockSpec((TQ, D), lambda j: (j, 0)),   # queries: streamed
            ],
            out_specs=pl.BlockSpec((1, 1), lambda j: (0, 0)),
            scratch_shapes=[
                pltpu.VMEM((B, 1), jnp.float32),    # running row max
                pltpu.VMEM((B, 1), jnp.float32),    # running row sum-exp
                pltpu.VMEM((B, 1), jnp.float32),    # per-context column lse
                pltpu.VMEM((B, 1), jnp.float32),    # per-context diagonal lse
                pltpu.VMEM((TQ, TG), jnp.float32),  # one-hot group matrix
            ]),
        compiler_params=pltpu.CompilerParams(
            dimension_semantics=("arbitrary",),     # online-reduction axis
            vmem_limit_bytes=vmem_limit),
    )(contexts, queries)
    return out[0, 0]


if __name__ == "__main__":
    from jax.scipy.special import logsumexp

    B, F, D = 8, 8, 32        # 8 contexts, 8 frames per query group, dim 32
    key = jax.random.PRNGKey(0)
    kc, kq = jax.random.split(key)
    contexts = jax.random.normal(kc, (B, D), dtype=jnp.float32)
    queries = jax.random.normal(kq, (B * F, D), dtype=jnp.float32)
    # Make values bf16-exact so MXU precision choices cannot affect the check.
    contexts = contexts.astype(jnp.bfloat16).astype(jnp.float32)
    queries = queries.astype(jnp.bfloat16).astype(jnp.float32)

    # Streamed path (groups_per_block=2 -> 4 pipelined grid steps) and the
    # auto-tiled path (single step at this tiny size).
    loss_stream = frame_nce_loss(contexts, queries, groups_per_block=2)
    loss_auto = frame_nce_loss(contexts, queries)
    jax.block_until_ready((loss_stream, loss_auto))

    # Plain-JAX reference mirroring the PyTorch module.
    x = jnp.matmul(contexts, queries.T).reshape(B, B, F)
    eye = jnp.eye(B, dtype=jnp.float32)[:, :, None]
    nominator = logsumexp((x * eye).sum(axis=1), axis=1)                  # (B,)
    denominator = logsumexp(
        jnp.concatenate([x, jnp.transpose(x, (1, 0, 2))], axis=1).reshape(B, -1),
        axis=1)                                                           # (B,)
    ref = jnp.mean(denominator - nominator)

    assert jnp.allclose(loss_stream, ref, atol=5e-3, rtol=5e-3), (loss_stream, ref)
    assert jnp.allclose(loss_auto, ref, atol=5e-3, rtol=5e-3), (loss_auto, ref)
    print("KERNEL_OK")
</pallas_src>

<mosaic_0001>
module attributes {stable_mosaic.version = 11 : i64} {
  func.func @_frame_nce_kernel(%arg0: i32, %arg1: memref<8x32xf32, #tpu.memory_space<vmem>>, %arg2: memref<16x32xf32, #tpu.memory_space<vmem>>, %arg3: memref<1x1xf32, #tpu.memory_space<vmem>>, %arg4: memref<8x1xf32, #tpu.memory_space<vmem>>, %arg5: memref<8x1xf32, #tpu.memory_space<vmem>>, %arg6: memref<8x1xf32, #tpu.memory_space<vmem>>, %arg7: memref<8x1xf32, #tpu.memory_space<vmem>>, %arg8: memref<16x2xf32, #tpu.memory_space<vmem>>) attributes {dimension_semantics = [#tpu.dimension_semantics<arbitrary>], iteration_bounds = array<i64: 4>, scalar_prefetch = 0 : i64, scratch_operands = 5 : i64, tpu.core_type = #tpu.core_type<tc>, window_params = [{pipeline_mode = #tpu.pipeline_mode<synchronous>, transform_indices = @transform_0, window_bounds = array<i64: 8, 32>}, {transform_indices = @transform_1, window_bounds = array<i64: 16, 32>}, {pipeline_mode = #tpu.pipeline_mode<synchronous>, transform_indices = @transform_2, window_bounds = array<i64: 1, 1>}]} {
    %c0_i32 = arith.constant 0 : i32
    %0 = arith.cmpi eq, %arg0, %c0_i32 : i32
    %1 = arith.extui %0 : i1 to i32
    %c0_i32_0 = arith.constant 0 : i32
    %2 = arith.cmpi ne, %1, %c0_i32_0 : i32
    scf.if %2 {
      %cst_36 = arith.constant 0xFF800000 : f32
      %66 = vector.broadcast %cst_36 : f32 to vector<8x1xf32>
      %c0_37 = arith.constant 0 : index
      %c0_38 = arith.constant 0 : index
      %67 = vector.load %arg4[%c0_37, %c0_38] : memref<8x1xf32, #tpu.memory_space<vmem>>, vector<8x1xf32>
      tpu.vector_store %arg4[%c0_37, %c0_38], %66 {strides = array<i32>} : memref<8x1xf32, #tpu.memory_space<vmem>>, vector<8x1xf32>,
      %cst_39 = arith.constant 0.000000e+00 : f32
      %68 = vector.broadcast %cst_39 : f32 to vector<8x1xf32>
      %c0_40 = arith.constant 0 : index
      %c0_41 = arith.constant 0 : index
      %69 = vector.load %arg5[%c0_40, %c0_41] : memref<8x1xf32, #tpu.memory_space<vmem>>, vector<8x1xf32>
      tpu.vector_store %arg5[%c0_40, %c0_41], %68 {strides = array<i32>} : memref<8x1xf32, #tpu.memory_space<vmem>>, vector<8x1xf32>,
      %cst_42 = arith.constant 0.000000e+00 : f32
      %70 = vector.broadcast %cst_42 : f32 to vector<8x1xf32>
      %c0_43 = arith.constant 0 : index
      %c0_44 = arith.constant 0 : index
      %71 = vector.load %arg6[%c0_43, %c0_44] : memref<8x1xf32, #tpu.memory_space<vmem>>, vector<8x1xf32>
      tpu.vector_store %arg6[%c0_43, %c0_44], %70 {strides = array<i32>} : memref<8x1xf32, #tpu.memory_space<vmem>>, vector<8x1xf32>,
      %cst_45 = arith.constant 0.000000e+00 : f32
      %72 = vector.broadcast %cst_45 : f32 to vector<8x1xf32>
      %c0_46 = arith.constant 0 : index
      %c0_47 = arith.constant 0 : index
      %73 = vector.load %arg7[%c0_46, %c0_47] : memref<8x1xf32, #tpu.memory_space<vmem>>, vector<8x1xf32>
      tpu.vector_store %arg7[%c0_46, %c0_47], %72 {strides = array<i32>} : memref<8x1xf32, #tpu.memory_space<vmem>>, vector<8x1xf32>,
      %74 = tpu.iota {dimensions = array<i32: 0>} : vector<16x2xi32>
      %75 = tpu.iota {dimensions = array<i32: 1>} : vector<16x2xi32>
      %c8_i32 = arith.constant 8 : i32
      %76 = vector.broadcast %c8_i32 : i32 to vector<16x2xi32>
      %77 = arith.muli %75, %76 : vector<16x2xi32>
      %78 = arith.cmpi sge, %74, %77 : vector<16x2xi32>
      %c1_i32 = arith.constant 1 : i32
      %79 = vector.broadcast %c1_i32 : i32 to vector<16x2xi32>
      %80 = arith.addi %75, %79 : vector<16x2xi32>
      %c8_i32_48 = arith.constant 8 : i32
      %81 = vector.broadcast %c8_i32_48 : i32 to vector<16x2xi32>
      %82 = arith.muli %80, %81 : vector<16x2xi32>
      %83 = arith.cmpi slt, %74, %82 : vector<16x2xi32>
      %84 = arith.andi %78, %83 : vector<16x2xi1>
      %85 = arith.extui %84 : vector<16x2xi1> to vector<16x2xi32>
      %86 = arith.sitofp %85 : vector<16x2xi32> to vector<16x2xf32>
      %c0_49 = arith.constant 0 : index
      %c0_50 = arith.constant 0 : index
      %87 = vector.load %arg8[%c0_49, %c0_50] : memref<16x2xf32, #tpu.memory_space<vmem>>, vector<16x2xf32>
      tpu.vector_store %arg8[%c0_49, %c0_50], %86 {strides = array<i32>} : memref<16x2xf32, #tpu.memory_space<vmem>>, vector<16x2xf32>,
    } else {
    }
    %c0 = arith.constant 0 : index
    %c0_1 = arith.constant 0 : index
    %3 = vector.load %arg1[%c0, %c0_1] : memref<8x32xf32, #tpu.memory_space<vmem>>, vector<8x32xf32>
    %c0_2 = arith.constant 0 : index
    %c0_3 = arith.constant 0 : index
    %4 = vector.load %arg2[%c0_2, %c0_3] : memref<16x32xf32, #tpu.memory_space<vmem>>, vector<16x32xf32>
    %cst = arith.constant dense<0.000000e+00> : vector<8x16xf32>
    %5 = tpu.matmul %3, %4, %cst {dimension_numbers = #tpu.dot_dimension_numbers<[1], [1], [0], [0], [0, 0, 1, 0], [], []>} : vector<8x32xf32>, vector<16x32xf32>, vector<8x16xf32> -> vector<8x16xf32>
    %cst_4 = arith.constant dense<0xFF800000> : vector<8xf32>
    %6 = vector.multi_reduction <maximumf>, %5, %cst_4 [1] : vector<8x16xf32> to vector<8xf32>
    %7 = vector.shape_cast %6 : vector<8xf32> to vector<8x1xf32>
    %c0_5 = arith.constant 0 : index
    %c0_6 = arith.constant 0 : index
    %8 = vector.load %arg4[%c0_5, %c0_6] : memref<8x1xf32, #tpu.memory_space<vmem>>, vector<8x1xf32>
    %9 = arith.maximumf %8, %7 : vector<8x1xf32>
    %10 = vector.broadcast %9 : vector<8x1xf32> to vector<8x16xf32>
    %11 = arith.subf %5, %10 : vector<8x16xf32>
    %12 = math.exp %11 : vector<8x16xf32>
    %c0_7 = arith.constant 0 : index
    %c0_8 = arith.constant 0 : index
    %13 = vector.load %arg8[%c0_7, %c0_8] : memref<16x2xf32, #tpu.memory_space<vmem>>, vector<16x2xf32>
    %cst_9 = arith.constant dense<0.000000e+00> : vector<8x2xf32>
    %14 = tpu.matmul %12, %13, %cst_9 {dimension_numbers = #tpu.dot_dimension_numbers<[1], [0], [0], [1], [0, 0, 1, 1], [], []>, precision = #tpu.contract_precision<fp32>} : vector<8x16xf32>, vector<16x2xf32>, vector<8x2xf32> -> vector<8x2xf32>
    %cst_10 = arith.constant dense<0.000000e+00> : vector<8xf32>
    %15 = vector.multi_reduction <add>, %14, %cst_10 [1] : vector<8x2xf32> to vector<8xf32>
    %16 = vector.shape_cast %15 : vector<8xf32> to vector<8x1xf32>
    %c0_11 = arith.constant 0 : index
    %c0_12 = arith.constant 0 : index
    %17 = vector.load %arg5[%c0_11, %c0_12] : memref<8x1xf32, #tpu.memory_space<vmem>>, vector<8x1xf32>
    %c0_13 = arith.constant 0 : index
    %c0_14 = arith.constant 0 : index
    %18 = vector.load %arg4[%c0_13, %c0_14] : memref<8x1xf32, #tpu.memory_space<vmem>>, vector<8x1xf32>
    %19 = arith.subf %18, %9 : vector<8x1xf32>
    %20 = math.exp %19 : vector<8x1xf32>
    %21 = arith.mulf %17, %20 : vector<8x1xf32>
    %22 = arith.addf %21, %16 : vector<8x1xf32>
    %c0_15 = arith.constant 0 : index
    %c0_16 = arith.constant 0 : index
    %23 = vector.load %arg5[%c0_15, %c0_16] : memref<8x1xf32, #tpu.memory_space<vmem>>, vector<8x1xf32>
    tpu.vector_store %arg5[%c0_15, %c0_16], %22 {strides = array<i32>} : memref<8x1xf32, #tpu.memory_space<vmem>>, vector<8x1xf32>,
    %c0_17 = arith.constant 0 : index
    %c0_18 = arith.constant 0 : index
    %24 = vector.load %arg4[%c0_17, %c0_18] : memref<8x1xf32, #tpu.memory_space<vmem>>, vector<8x1xf32>
    tpu.vector_store %arg4[%c0_17, %c0_18], %9 {strides = array<i32>} : memref<8x1xf32, #tpu.memory_space<vmem>>, vector<8x1xf32>,
    %25 = math.log %14 : vector<8x2xf32>
    %26 = vector.broadcast %9 : vector<8x1xf32> to vector<8x2xf32>
    %27 = arith.addf %26, %25 : vector<8x2xf32>
    %28 = tpu.iota {dimensions = array<i32: 0>} : vector<8x2xi32>
    %29 = tpu.iota {dimensions = array<i32: 1>} : vector<8x2xi32>
    %c2_i32 = arith.constant 2 : i32
    %30 = arith.muli %arg0, %c2_i32 : i32
    %31 = vector.broadcast %30 : i32 to vector<8x2xi32>
    %32 = arith.addi %29, %31 : vector<8x2xi32>
    %33 = arith.cmpi eq, %28, %32 : vector<8x2xi32>
    %cst_19 = arith.constant dense<0xFF800000> : vector<2xf32>
    %34 = vector.multi_reduction <maximumf>, %27, %cst_19 [0] : vector<8x2xf32> to vector<2xf32>
    %35 = vector.shape_cast %34 : vector<2xf32> to vector<1x2xf32>
    %cst_20 = arith.constant 0xFF800000 : f32
    %36 = vector.broadcast %cst_20 : f32 to vector<1x2xf32>
    %37 = arith.cmpf oeq, %35, %36 : vector<1x2xf32>
    %cst_21 = arith.constant 0.000000e+00 : f32
    %38 = vector.broadcast %cst_21 : f32 to vector<1x2xf32>
    %39 = arith.select %37, %38, %35 : vector<1x2xi1>, vector<1x2xf32>
    %40 = vector.broadcast %39 : vector<1x2xf32> to vector<8x2xf32>
    %41 = arith.subf %27, %40 : vector<8x2xf32>
    %42 = math.exp %41 : vector<8x2xf32>
    %cst_22 = arith.constant dense<0.000000e+00> : vector<2xf32>
    %43 = vector.multi_reduction <add>, %42, %cst_22 [0] : vector<8x2xf32> to vector<2xf32>
    %44 = vector.shape_cast %43 : vector<2xf32> to vector<1x2xf32>
    %45 = math.log %44 : vector<1x2xf32>
    %46 = arith.addf %39, %45 : vector<1x2xf32>
    %c0_23 = arith.constant 0 : index
    %c0_24 = arith.constant 0 : index
    %47 = vector.load %arg6[%c0_23, %c0_24] : memref<8x1xf32, #tpu.memory_space<vmem>>, vector<8x1xf32>
    %cst_25 = arith.constant 0.000000e+00 : f32
    %48 = vector.shape_cast %46 : vector<1x2xf32> to vector<1x2xf32>
    %49 = vector.broadcast %48 : vector<1x2xf32> to vector<8x2xf32>
    %50 = vector.broadcast %cst_25 : f32 to vector<8x2xf32>
    %51 = arith.select %33, %49, %50 : vector<8x2xi1>, vector<8x2xf32>
    %cst_26 = arith.constant dense<0.000000e+00> : vector<8xf32>
    %52 = vector.multi_reduction <add>, %51, %cst_26 [1] : vector<8x2xf32> to vector<8xf32>
    %53 = vector.shape_cast %52 : vector<8xf32> to vector<8x1xf32>
    %54 = arith.addf %47, %53 : vector<8x1xf32>
    %c0_27 = arith.constant 0 : index
    %c0_28 = arith.constant 0 : index
    %55 = vector.load %arg6[%c0_27, %c0_28] : memref<8x1xf32, #tpu.memory_space<vmem>>, vector<8x1xf32>
    tpu.vector_store %arg6[%c0_27, %c0_28], %54 {strides = array<i32>} : memref<8x1xf32, #tpu.memory_space<vmem>>, vector<8x1xf32>,
    %c0_29 = arith.constant 0 : index
    %c0_30 = arith.constant 0 : index
    %56 = vector.load %arg7[%c0_29, %c0_30] : memref<8x1xf32, #tpu.memory_space<vmem>>, vector<8x1xf32>
    %cst_31 = arith.constant 0.000000e+00 : f32
    %57 = vector.broadcast %cst_31 : f32 to vector<8x2xf32>
    %58 = arith.select %33, %27, %57 : vector<8x2xi1>, vector<8x2xf32>
    %cst_32 = arith.constant dense<0.000000e+00> : vector<8xf32>
    %59 = vector.multi_reduction <add>, %58, %cst_32 [1] : vector<8x2xf32> to vector<8xf32>
    %60 = vector.shape_cast %59 : vector<8xf32> to vector<8x1xf32>
    %61 = arith.addf %56, %60 : vector<8x1xf32>
    %c0_33 = arith.constant 0 : index
    %c0_34 = arith.constant 0 : index
    %62 = vector.load %arg7[%c0_33, %c0_34] : memref<8x1xf32, #tpu.memory_space<vmem>>, vector<8x1xf32>
    tpu.vector_store %arg7[%c0_33, %c0_34], %61 {strides = array<i32>} : memref<8x1xf32, #tpu.memory_space<vmem>>, vector<8x1xf32>,
    %c3_i32 = arith.constant 3 : i32
    %63 = arith.cmpi eq, %arg0, %c3_i32 : i32
    %64 = arith.extui %63 : i1 to i32
    %c0_i32_35 = arith.constant 0 : i32
    %65 = arith.cmpi ne, %64, %c0_i32_35 : i32
    scf.if %65 {
      %c0_36 = arith.constant 0 : index
      %c0_37 = arith.constant 0 : index
      %66 = vector.load %arg4[%c0_36, %c0_37] : memref<8x1xf32, #tpu.memory_space<vmem>>, vector<8x1xf32>
      %c0_38 = arith.constant 0 : index
      %c0_39 = arith.constant 0 : index
      %67 = vector.load %arg5[%c0_38, %c0_39] : memref<8x1xf32, #tpu.memory_space<vmem>>, vector<8x1xf32>
      %68 = math.log %67 : vector<8x1xf32>
      %69 = arith.addf %66, %68 : vector<8x1xf32>
      %c0_40 = arith.constant 0 : index
      %c0_41 = arith.constant 0 : index
      %70 = vector.load %arg6[%c0_40, %c0_41] : memref<8x1xf32, #tpu.memory_space<vmem>>, vector<8x1xf32>
      %71 = arith.maximumf %69, %70 : vector<8x1xf32>
      %72 = arith.subf %69, %71 : vector<8x1xf32>
      %73 = math.exp %72 : vector<8x1xf32>
      %74 = arith.subf %70, %71 : vector<8x1xf32>
      %75 = math.exp %74 : vector<8x1xf32>
      %76 = arith.addf %73, %75 : vector<8x1xf32>
      %77 = math.log %76 : vector<8x1xf32>
      %78 = arith.addf %71, %77 : vector<8x1xf32>
      %c0_42 = arith.constant 0 : index
      %c0_43 = arith.constant 0 : index
      %79 = vector.load %arg7[%c0_42, %c0_43] : memref<8x1xf32, #tpu.memory_space<vmem>>, vector<8x1xf32>
      %80 = arith.subf %78, %79 : vector<8x1xf32>
      %81 = vector.shape_cast %80 : vector<8x1xf32> to vector<1x8x1xf32>
      %cst_44 = arith.constant dense<0.000000e+00> : vector<1xf32>
      %82 = vector.multi_reduction <add>, %81, %cst_44 [1, 2] : vector<1x8x1xf32> to vector<1xf32>
      %83 = vector.shape_cast %82 : vector<1xf32> to vector<1x1x1xf32>
      %84 = vector.extract %83[0, 0, 0] : f32 from vector<1x1x1xf32>
      %85 = vector.broadcast %84 : f32 to vector<1x1xf32>
      %cst_45 = arith.constant 8.000000e+00 : f32
      %86 = vector.broadcast %cst_45 : f32 to vector<1x1xf32>
      %87 = arith.divf %85, %86 : vector<1x1xf32>
      %c0_46 = arith.constant 0 : index
      %c0_47 = arith.constant 0 : index
      %88 = vector.load %arg3[%c0_46, %c0_47] : memref<1x1xf32, #tpu.memory_space<vmem>>, vector<1x1xf32>
      tpu.vector_store %arg3[%c0_46, %c0_47], %87 {strides = array<i32>} : memref<1x1xf32, #tpu.memory_space<vmem>>, vector<1x1xf32>,
    } else {
    }
    return
  }
  func.func @transform_0(%arg0: i32) -> (i32, i32) {
    %c0_i32 = arith.constant 0 : i32
    %c0_i32_0 = arith.constant 0 : i32
    %c0_i32_1 = arith.constant 0 : i32
    return %c0_i32, %c0_i32_0 : i32, i32
  }
  func.func @transform_1(%arg0: i32) -> (i32, i32) {
    %c0_i32 = arith.constant 0 : i32
    %c0_i32_0 = arith.constant 0 : i32
    return %arg0, %c0_i32 : i32, i32
  }
  func.func @transform_2(%arg0: i32) -> (i32, i32) {
    %c0_i32 = arith.constant 0 : i32
    %c0_i32_0 = arith.constant 0 : i32
    %c0_i32_1 = arith.constant 0 : i32
    return %c0_i32, %c0_i32_0 : i32, i32
  }
}

</mosaic_0001>

<llo_original>
// kernel: tpu_custom_call.1
$region0: #{tpu_custom_call.1}
  #allocation0 [shape = 'u32[]', space=smem, size = 0x4, offset = 0x4, fixed_abs, tag = 'smem constant byte address 0x4 - core index']
  #allocation1 [shape = 'u32[144,128]{1,0:T(1,128)}', space=vmem, size = 0x12000, scoped, tag = 'internal scratch']
  #allocation2 [shape = 'f32[8,1]{1,0:T(8,128)}', space=vmem, size = 0x1000, scoped, tag = 'scratch operand']
  #allocation3 [shape = 'f32[8,1]{1,0:T(8,128)}', space=vmem, size = 0x1000, scoped, tag = 'scratch operand']
  #allocation4 [shape = 'f32[8,1]{1,0:T(8,128)}', space=vmem, size = 0x1000, scoped, tag = 'scratch operand']
  #allocation5 [shape = 'f32[8,1]{1,0:T(8,128)}', space=vmem, size = 0x1000, scoped, tag = 'scratch operand']
  #allocation6 [shape = 'f32[16,2]{1,0:T(8,128)}', space=vmem, size = 0x2000, scoped, tag = 'scratch operand']
  %s0 = inlined_call_operand.vmem [shape: f32[8,32], index: 0, kind: input, shape index: {}]
  %s1 = inlined_call_operand.vmem [shape: f32[64,32], index: 1, kind: input, shape index: {}]
  %s2 = inlined_call_operand.hbm [shape: f32[1,1], index: 2, kind: output, shape index: {}]
  %s3 = sld [smem:[#allocation0]]
  $region49: #{tpu_custom_call.1} parent=0
    _
  %s5 = ssub.s32 1, %s3
  %s6 = scalar_select 0, %s5, %s3
  $region1: #{tpu_custom_call.1} parent=0
    #allocation7 [shape = 'u8[512]{0}', space=vmem, size = 0x400, scoped, tag = 'output window, operand 0, single buffered']
    #allocation8 [shape = 's32[2]{0}', space=sflag, size = 0x8, scoped, tag = 'scoped memory for tpu_custom_call.1']
    %7 = vsyncpa [#allocation8], 0
    loop: start=0, step=1, limit=6
    $region2: #{tpu_custom_call.1} parent=1 // loop_pre_header
      _
    $region3: #{tpu_custom_call.1} parent=1 // loop_header
      %s9 = sphi 0, %s13
      %p10 = scmp.ge.s32.totalorder %s9, 6
      %s17 = sphi 0, %s17
      %s19 = sphi 0, %s17
      %s20 = sphi 0, %s19
      %s34 = sphi 0, %s20
      %s40 = sphi 0, %s42
      %s43 = sphi 0, %s40
      %s44 = sphi 0, %s43
      %s60 = sphi 0, %s44
      %s64 = sphi 0, %s64
      %s66 = sphi 0, %s64
      %s67 = sphi 0, %s66
      %s81 = sphi 0, %s67
    $region4: #{tpu_custom_call.1} parent=1 // loop_header_branch
      %12 = sbr.rel (%p10) target = $region8
    $region5: #{tpu_custom_call.1} parent=1 // loop_body
      %s14 = ssub.s32 %s9, 1
      %s15 = ssub.s32 %s9, 2
      %s16 = sadd.s32 %s9, 1
      %s18 = sadd.s32 %s17, 1
      %p21 = scmp.eq.s32.totalorder %s9, 3
      %p22 = scmp.ne.s32.totalorder %s17, %s19
      %p23 = scmp.eq.s32.totalorder %s9, 0
      %p24 = por %p22, %p23
      %p25 = scmp.ne.s32.totalorder %s17, %s19
      %p26 = scmp.eq.s32.totalorder %s14, 3
      %p27 = por %p25, %p26
      %p28 = scmp.ne.s32.totalorder %s19, %s20
      %p29 = scmp.eq.s32.totalorder %s14, 0
      %p30 = por %p28, %p29
      %p31 = scmp.ne.s32.totalorder %s19, %s20
      %p32 = scmp.eq.s32.totalorder %s15, 3
      %p33 = por %p31, %p32
      %p35 = scmp.ne.s32.totalorder %s20, %s34
      %p36 = scmp.eq.s32.totalorder %s15, 0
      %p37 = por %p35, %p36
      %s38 = ssub.s32 %s9, %s16
      %p39 = scmp.eq.s32.totalorder %s38, 0
      %s41 = sadd.s32 %s40, 1
      %s42 = scalar_select %p39, %s40, %s41
      %p45 = pneg %p39
      %p46 = scmp.eq.s32.totalorder %s9, 3
      %p47 = por %p45, %p46
      %p48 = scmp.ne.s32.totalorder %s40, %s43
      %p49 = scmp.eq.s32.totalorder %s9, 0
      %p50 = por %p48, %p49
      %p51 = scmp.ne.s32.totalorder %s40, %s43
      %p52 = scmp.eq.s32.totalorder %s14, 3
      %p53 = por %p51, %p52
      %p54 = scmp.ne.s32.totalorder %s43, %s44
      %p55 = scmp.eq.s32.totalorder %s14, 0
      %p56 = por %p54, %p55
      %p57 = scmp.ne.s32.totalorder %s43, %s44
      %p58 = scmp.eq.s32.totalorder %s15, 3
      %p59 = por %p57, %p58
      %p61 = scmp.ne.s32.totalorder %s44, %s60
      %p62 = scmp.eq.s32.totalorder %s15, 0
      %p63 = por %p61, %p62
      %s65 = sadd.s32 %s64, 1
      %p68 = scmp.eq.s32.totalorder %s9, 3
      %p69 = scmp.ne.s32.totalorder %s64, %s66
      %p70 = scmp.eq.s32.totalorder %s9, 0
      %p71 = por %p69, %p70
      %p72 = scmp.ne.s32.totalorder %s64, %s66
      %p73 = scmp.eq.s32.totalorder %s14, 3
      %p74 = por %p72, %p73
      %p75 = scmp.ne.s32.totalorder %s66, %s67
      %p76 = scmp.eq.s32.totalorder %s14, 0
      %p77 = por %p75, %p76
      %p78 = scmp.ne.s32.totalorder %s66, %s67
      %p79 = scmp.eq.s32.totalorder %s15, 3
      %p80 = por %p78, %p79
      %p82 = scmp.ne.s32.totalorder %s67, %s81
      %p83 = scmp.eq.s32.totalorder %s15, 0
      %p84 = por %p82, %p83
      %p85 = scmp.le.s32.totalorder 1, %s9
      %p86 = scmp.lt.s32.totalorder %s9, 5
      %p87 = pnand %p85, %p86
      %p88 = pneg %p87
      // Predicated region
      $region9: #{tpu_custom_call.1} parent=5 // pred_check
        _
      $region10: #{tpu_custom_call.1} parent=5 // pred_check_branch
        %90 = sbr.rel (%p87) target = $region12
      $region11: #{tpu_custom_call.1} parent=5 // pred_region
        %s91 = ssub.s32 %s9, 1
        // Predicated region
        $region13: #{tpu_custom_call.1} parent=11 // pred_check
          %p92 = pneg %p30
        $region14: #{tpu_custom_call.1} parent=11 // pred_check_branch
          %94 = sbr.rel (%p92) target = $region16
        $region15: #{tpu_custom_call.1} parent=11 // pred_region
          _
        $region16: #{tpu_custom_call.1} parent=11 // pred_fallthru
          _
      $region12: #{tpu_custom_call.1} parent=5 // pred_fallthru
        _
      %p95 = scmp.lt.s32.totalorder %s9, 4
      // Predicated region
      $region17: #{tpu_custom_call.1} parent=5 // pred_check
        %p96 = pneg %p95
      $region18: #{tpu_custom_call.1} parent=5 // pred_check_branch
        %98 = sbr.rel (%p96) target = $region20
      $region19: #{tpu_custom_call.1} parent=5 // pred_region
        // Predicated region
        $region21: #{tpu_custom_call.1} parent=19 // pred_check
          %p99 = pneg %p50
        $region22: #{tpu_custom_call.1} parent=19 // pred_check_branch
          %101 = sbr.rel (%p99) target = $region24
        $region23: #{tpu_custom_call.1} parent=19 // pred_region
          %s102 = smul.u32 2, %s9
          %p103 = scmp.lt.s32.totalorder %s102, 7
          %s104 = scalar_select %p103, %s102, 7
          %s105 = smul.addr %s104, 8
          %s106 = scalar_lea.vmem %s1, %s105
          %s107 = smul.u32 2, %s9
        $region24: #{tpu_custom_call.1} parent=19 // pred_fallthru
          _
      $region20: #{tpu_custom_call.1} parent=5 // pred_fallthru
        _
      %p108 = scmp.le.s32.totalorder 1, %s9
      %p109 = scmp.lt.s32.totalorder %s9, 5
      %p110 = pnand %p108, %p109
      %p111 = pneg %p110
      // Predicated region
      $region25: #{tpu_custom_call.1} parent=5 // pred_check
        _
      $region26: #{tpu_custom_call.1} parent=5 // pred_check_branch
        %113 = sbr.rel (%p110) target = $region28
      $region27: #{tpu_custom_call.1} parent=5 // pred_region
        %s114 = ssub.s32 %s9, 1
        %p115 = pneg %p30
        %p116 = pneg %p27
        %s117 = smul.u32 2, %s14
        %p118 = scmp.lt.s32.totalorder %s117, 7
        %s119 = scalar_select %p118, %s117, 7
        %s120 = smul.addr %s119, 8
        %s121 = scalar_lea.vmem %s1, %s120
        %p122 = pneg %p56
        %p123 = pneg %p53
        %p124 = pneg %p77
        %p125 = pneg %p74
        %s126 = smul.u32 2, %s14
        %p127 = scmp.lt.s32.totalorder %s126, 7
        %s128 = scalar_select %p127, %s126, 7
        %s129 = smul.addr %s128, 8
        %s130 = scalar_lea.vmem %s1, %s129
        %s131 = smul.u32 2, %s14
        %p132 = scmp.eq.s32.totalorder %s14, 0
        // Predicated region
        $region29: #{tpu_custom_call.1} parent=27 // pred_check
          %p133 = pneg %p132
        $region30: #{tpu_custom_call.1} parent=27 // pred_check_branch
          %135 = sbr.rel (%p133) target = $region32
        $region31: #{tpu_custom_call.1} parent=27 // pred_region
          %vm136 = vcmask 7168
          %137 = vst.msk [vmem:[#allocation2] sm:$0xff] %vm136, -inf
          %138 = vst.msk [vmem:[#allocation3] sm:$0xff] %vm136, 0.0
          %139 = vst.msk [vmem:[#allocation4] sm:$0xff] %vm136, 0.0
          %140 = vst.msk [vmem:[#allocation5] sm:$0xff] %vm136, 0.0
          %v141 = vlaneseq
          %v142 = vshrl.u32 %v141, 7
          %v143 = vadd.s32 %v142, 8
          %v144 = vlaneseq
          %v145 = vand.u32 %v144, 127
          %v146 = vmul.u32 %v145, 8
          %vm147 = vcmp.ge.s32.totalorder %v142, %v146
          %vm148 = vcmp.ge.s32.totalorder %v143, %v146
          %v149 = vadd.s32 %v145, 1
          %v150 = vmul.u32 %v149, 8
          %vm151 = vcmp.lt.s32.totalorder %v142, %v150
          %vm152 = vcmp.lt.s32.totalorder %v143, %v150
          %vm153 = vmand %vm147, %vm151
          %vm154 = vmand %vm148, %vm152
          %v155 = vsel %vm153, 1, 0
          %v156 = vsel %vm154, 1, 0
          %v157 = vcvt.s32.f32 %v155
          %v158 = vcvt.s32.f32 %v156
          %vm159 = vcmask 15360
          %160 = vst.msk [vmem:[#allocation6] sm:$0xff] %vm159, %v157
          %161 = vst.msk [vmem:[#allocation6 + $0x8] sm:$0xff] %vm159, %v158
        $region32: #{tpu_custom_call.1} parent=27 // pred_fallthru
          _
        %v162 = vld [vmem:[%s0] sm:$0xff]
        %v163 = vld [vmem:[%s130] sm:$0xff]
        %v164 = vld [vmem:[%s130 + $0x8] sm:$0xff]
        %vm165 = vcmask 261120
        %v167 = vsel %vm165, %v162, 0
        %v170 = vsel %vm165, %v163, 0
        %v173 = vsel %vm165, %v164, 0
        %175 = vmatprep.subr.mxu0 0.0
        %176 = vmatpush1.xpose.msra.mxu0 0.0
        %177 = vmatprep.subr.mxu0 0.0
        %178 = vmatpush1.xpose.msra.mxu0 0.0
        %179 = vmatprep.subr.mxu0 0.0
        %180 = vmatpush1.xpose.msra.mxu0 0.0
        %181 = vmatprep.subr.mxu0 0.0
        %182 = vmatpush1.xpose.msra.mxu0 0.0
        %183 = vmatprep.subr.mxu0 0.0
        %184 = vmatpush1.xpose.msra.mxu0 0.0
        %185 = vmatprep.subr.mxu0 0.0
        %186 = vmatpush1.xpose.msra.mxu0 0.0
        %187 = vmatprep.subr.mxu0 0.0
        %188 = vmatpush1.xpose.msra.mxu0 0.0
        %189 = vmatprep.subr.mxu0 0.0
        %190 = vmatpush1.xpose.msra.mxu0 0.0
        %191 = vmatprep.subr.mxu0 0.0
        %192 = vmatpush1.xpose.msra.mxu0 0.0
        %193 = vmatprep.subr.mxu0 0.0
        %194 = vmatpush1.xpose.msra.mxu0 0.0
        %195 = vmatprep.subr.mxu0 0.0
        %196 = vmatpush1.xpose.msra.mxu0 0.0
        %197 = vmatprep.subr.mxu0 0.0
        %198 = vmatpush1.xpose.msra.mxu0 0.0
        %199 = vmatprep.subr.mxu0 0.0
        %200 = vmatpush1.xpose.msra.mxu0 0.0
        %201 = vmatprep.subr.mxu0 0.0
        %202 = vmatpush1.xpose.msra.mxu0 0.0
        %203 = vmatprep.subr.mxu0 0.0
        %204 = vmatpush1.xpose.msra.mxu0 %v173
        %205 = vmatprep.subr.mxu0 0.0
        %206 = vmatpush1.xpose.msra.mxu0 %v170
        %207 = vmatprep.subr.mxu0 0.0
        %208 = vmatpush2.xpose.msra.mxu0 0.0
        %209 = vmatprep.subr.mxu0 0.0
        %210 = vmatpush2.xpose.msra.mxu0 0.0
        %211 = vmatprep.subr.mxu0 0.0
        %212 = vmatpush2.xpose.msra.mxu0 0.0
        %213 = vmatprep.subr.mxu0 0.0
        %214 = vmatpush2.xpose.msra.mxu0 0.0
        %215 = vmatprep.subr.mxu0 0.0
        %216 = vmatpush2.xpose.msra.mxu0 0.0
        %217 = vmatprep.subr.mxu0 0.0
        %218 = vmatpush2.xpose.msra.mxu0 0.0
        %219 = vmatprep.subr.mxu0 0.0
        %220 = vmatpush2.xpose.msra.mxu0 0.0
        %221 = vmatprep.subr.mxu0 0.0
        %222 = vmatpush2.xpose.msra.mxu0 0.0
        %223 = vmatprep.subr.mxu0 0.0
        %224 = vmatpush2.xpose.msra.mxu0 0.0
        %225 = vmatprep.subr.mxu0 0.0
        %226 = vmatpush2.xpose.msra.mxu0 0.0
        %227 = vmatprep.subr.mxu0 0.0
        %228 = vmatpush2.xpose.msra.mxu0 0.0
        %229 = vmatprep.subr.mxu0 0.0
        %230 = vmatpush2.xpose.msra.mxu0 0.0
        %231 = vmatprep.subr.mxu0 0.0
        %232 = vmatpush2.xpose.msra.mxu0 0.0
        %233 = vmatprep.subr.mxu0 0.0
        %234 = vmatpush2.xpose.msra.mxu0 0.0
        %235 = vmatprep.subr.mxu0 0.0
        %236 = vmatpush2.xpose.msra.mxu0 0.0
        %237 = vmatprep.subr.mxu0 0.0
        %238 = vmatpush2.xpose.msra.mxu0 0.0
        %239 = vmatprep.mubr.f32.mxu0 0.0
        %240 = vmatmul.mubr.f32.gmra.mxu0 %v167
        %v241 = vpop.f32.mrf.mxu0
        %v242 = vadd.f32 0.0, %v241
        %v243 = vpop.f32.mrf.mxu0
        %244 = vdwg.mxu0
        %vm245 = vcmask 130048
        %v246 = vsel %vm245, %v242, -inf
        %247 = vmax.xlane.f32.xlu0 %v246
        %v248 = vpop.xlane.xlu0 %247
        %v249 = vld [vmem:[#allocation2] sm:$0xff]
        %v250 = vmax.f32 %v249, %v248
        %252 = vset.pattern.permute.xlu0 0
        %253 = vperm.xlu0 %252, %v250
        %v254 = vpop.permute.xlu0 %253
        %v256 = vsub.f32 %v242, %v254
        %v257 = vmul.f32 %v256, 1.442695
        %v258 = vpow.pop %v257
        %v259 = vld [vmem:[#allocation6] sm:$0xff]
        %v260 = vld [vmem:[#allocation6 + $0x8] sm:$0xff]
        %v262 = vsel %vm245, %v258, 0
        %264 = vmatprep.subr.mxu0 0.0
        %265 = vmatpush1.msra.mxu0 0.0
        %266 = vmatprep.subr.mxu0 0.0
        %267 = vmatpush1.msra.mxu0 0.0
        %268 = vmatprep.subr.mxu0 0.0
        %269 = vmatpush1.msra.mxu0 0.0
        %270 = vmatprep.subr.mxu0 0.0
        %271 = vmatpush1.msra.mxu0 0.0
        %272 = vmatprep.subr.mxu0 0.0
        %273 = vmatpush1.msra.mxu0 0.0
        %274 = vmatprep.subr.mxu0 0.0
        %275 = vmatpush1.msra.mxu0 0.0
        %276 = vmatprep.subr.mxu0 0.0
        %277 = vmatpush1.msra.mxu0 0.0
        %278 = vmatprep.subr.mxu0 0.0
        %279 = vmatpush1.msra.mxu0 0.0
        %280 = vmatprep.subr.mxu0 0.0
        %281 = vmatpush1.msra.mxu0 0.0
        %282 = vmatprep.subr.mxu0 0.0
        %283 = vmatpush1.msra.mxu0 0.0
        %284 = vmatprep.subr.mxu0 0.0
        %285 = vmatpush1.msra.mxu0 0.0
        %286 = vmatprep.subr.mxu0 0.0
        %287 = vmatpush1.msra.mxu0 0.0
        %288 = vmatprep.subr.mxu0 0.0
        %289 = vmatpush1.msra.mxu0 0.0
        %290 = vmatprep.subr.mxu0 0.0
        %291 = vmatpush1.msra.mxu0 0.0
        %292 = vmatprep.subr.mxu0 0.0
        %v293 = vand.u32 %v260, 4294901760
        %294 = vmatpush1.msra.mxu0 %v293
        %295 = vmatprep.subr.mxu0 0.0
        %v296 = vand.u32 %v259, 4294901760
        %297 = vmatpush1.msra.mxu0 %v296
        %298 = vmatprep.subr.mxu0 0.0
        %299 = vmatpush2.msra.mxu0 0.0
        %300 = vmatprep.subr.mxu0 0.0
        %301 = vmatpush2.msra.mxu0 0.0
        %302 = vmatprep.subr.mxu0 0.0
        %303 = vmatpush2.msra.mxu0 0.0
        %304 = vmatprep.subr.mxu0 0.0
        %305 = vmatpush2.msra.mxu0 0.0
        %306 = vmatprep.subr.mxu0 0.0
        %307 = vmatpush2.msra.mxu0 0.0
        %308 = vmatprep.subr.mxu0 0.0
        %309 = vmatpush2.msra.mxu0 0.0
        %310 = vmatprep.subr.mxu0 0.0
        %311 = vmatpush2.msra.mxu0 0.0
        %312 = vmatprep.subr.mxu0 0.0
        %313 = vmatpush2.msra.mxu0 0.0
        %314 = vmatprep.subr.mxu0 0.0
        %315 = vmatpush2.msra.mxu0 0.0
        %316 = vmatprep.subr.mxu0 0.0
        %317 = vmatpush2.msra.mxu0 0.0
        %318 = vmatprep.subr.mxu0 0.0
        %319 = vmatpush2.msra.mxu0 0.0
        %320 = vmatprep.subr.mxu0 0.0
        %321 = vmatpush2.msra.mxu0 0.0
        %322 = vmatprep.subr.mxu0 0.0
        %323 = vmatpush2.msra.mxu0 0.0
        %324 = vmatprep.subr.mxu0 0.0
        %325 = vmatpush2.msra.mxu0 0.0
        %326 = vmatprep.subr.mxu0 0.0
        %327 = vmatpush2.msra.mxu0 0.0
        %328 = vmatprep.subr.mxu0 0.0
        %329 = vmatpush2.msra.mxu0 0.0
        %330 = vmatprep.mubr.f32.mxu0 0.0
        %v331 = vand.u32 %v262, 4294901760
        %v332 = vsub.f32 %v262, %v331
        %v333 = vand.u32 %v332, 4294901760
        %v334 = vsub.f32 %v332, %v333
        %v335 = vand.u32 %v334, 4294901760
        %336 = vmatmul.mubr.f32.gmra.mxu0 %v335
        %v337 = vpop.f32.mrf.mxu0
        %v338 = vadd.f32 0.0, %v337
        %v339 = vpop.f32.mrf.mxu0
        %340 = vdwg.mxu0
        %341 = vmatprep.subr.mxu0 0.0
        %342 = vmatpush1.msra.mxu0 0.0
        %343 = vmatprep.subr.mxu0 0.0
        %344 = vmatpush1.msra.mxu0 0.0
        %345 = vmatprep.subr.mxu0 0.0
        %346 = vmatpush1.msra.mxu0 0.0
        %347 = vmatprep.subr.mxu0 0.0
        %348 = vmatpush1.msra.mxu0 0.0
        %349 = vmatprep.subr.mxu0 0.0
        %350 = vmatpush1.msra.mxu0 0.0
        %351 = vmatprep.subr.mxu0 0.0
        %352 = vmatpush1.msra.mxu0 0.0
        %353 = vmatprep.subr.mxu0 0.0
        %354 = vmatpush1.msra.mxu0 0.0
        %355 = vmatprep.subr.mxu0 0.0
        %356 = vmatpush1.msra.mxu0 0.0
        %357 = vmatprep.subr.mxu0 0.0
        %358 = vmatpush1.msra.mxu0 0.0
        %359 = vmatprep.subr.mxu0 0.0
        %360 = vmatpush1.msra.mxu0 0.0
        %361 = vmatprep.subr.mxu0 0.0
        %362 = vmatpush1.msra.mxu0 0.0
        %363 = vmatprep.subr.mxu0 0.0
        %364 = vmatpush1.msra.mxu0 0.0
        %365 = vmatprep.subr.mxu0 0.0
        %366 = vmatpush1.msra.mxu0 0.0
        %367 = vmatprep.subr.mxu0 0.0
        %368 = vmatpush1.msra.mxu0 0.0
        %369 = vmatprep.subr.mxu0 0.0
        %v370 = vand.u32 %v260, 4294901760
        %v371 = vsub.f32 %v260, %v370
        %v372 = vand.u32 %v371, 4294901760
        %v373 = vsub.f32 %v371, %v372
        %v374 = vand.u32 %v373, 4294901760
        %375 = vmatpush1.msra.mxu0 %v374
        %376 = vmatprep.subr.mxu0 0.0
        %v377 = vand.u32 %v259, 4294901760
        %v378 = vsub.f32 %v259, %v377
        %v379 = vand.u32 %v378, 4294901760
        %v380 = vsub.f32 %v378, %v379
        %v381 = vand.u32 %v380, 4294901760
        %382 = vmatpush1.msra.mxu0 %v381
        %383 = vmatprep.subr.mxu0 0.0
        %384 = vmatpush2.msra.mxu0 0.0
        %385 = vmatprep.subr.mxu0 0.0
        %386 = vmatpush2.msra.mxu0 0.0
        %387 = vmatprep.subr.mxu0 0.0
        %388 = vmatpush2.msra.mxu0 0.0
        %389 = vmatprep.subr.mxu0 0.0
        %390 = vmatpush2.msra.mxu0 0.0
        %391 = vmatprep.subr.mxu0 0.0
        %392 = vmatpush2.msra.mxu0 0.0
        %393 = vmatprep.subr.mxu0 0.0
        %394 = vmatpush2.msra.mxu0 0.0
        %395 = vmatprep.subr.mxu0 0.0
        %396 = vmatpush2.msra.mxu0 0.0
        %397 = vmatprep.subr.mxu0 0.0
        %398 = vmatpush2.msra.mxu0 0.0
        %399 = vmatprep.subr.mxu0 0.0
        %400 = vmatpush2.msra.mxu0 0.0
        %401 = vmatprep.subr.mxu0 0.0
        %402 = vmatpush2.msra.mxu0 0.0
        %403 = vmatprep.subr.mxu0 0.0
        %404 = vmatpush2.msra.mxu0 0.0
        %405 = vmatprep.subr.mxu0 0.0
        %406 = vmatpush2.msra.mxu0 0.0
        %407 = vmatprep.subr.mxu0 0.0
        %408 = vmatpush2.msra.mxu0 0.0
        %409 = vmatprep.subr.mxu0 0.0
        %410 = vmatpush2.msra.mxu0 0.0
        %411 = vmatprep.subr.mxu0 0.0
        %412 = vmatpush2.msra.mxu0 0.0
        %413 = vmatprep.subr.mxu0 0.0
        %414 = vmatpush2.msra.mxu0 0.0
        %415 = vmatprep.mubr.f32.mxu0 0.0
        %v416 = vand.u32 %v262, 4294901760
        %417 = vmatmul.mubr.f32.gmra.mxu0 %v416
        %v418 = vpop.f32.mrf.mxu0
        %v419 = vadd.f32 %v338, %v418
        %v420 = vpop.f32.mrf.mxu0
        %421 = vdwg.mxu0
        %422 = vmatprep.subr.mxu0 0.0
        %423 = vmatpush1.msra.mxu0 0.0
        %424 = vmatprep.subr.mxu0 0.0
        %425 = vmatpush1.msra.mxu0 0.0
        %426 = vmatprep.subr.mxu0 0.0
        %427 = vmatpush1.msra.mxu0 0.0
        %428 = vmatprep.subr.mxu0 0.0
        %429 = vmatpush1.msra.mxu0 0.0
        %430 = vmatprep.subr.mxu0 0.0
        %431 = vmatpush1.msra.mxu0 0.0
        %432 = vmatprep.subr.mxu0 0.0
        %433 = vmatpush1.msra.mxu0 0.0
        %434 = vmatprep.subr.mxu0 0.0
        %435 = vmatpush1.msra.mxu0 0.0
        %436 = vmatprep.subr.mxu0 0.0
        %437 = vmatpush1.msra.mxu0 0.0
        %438 = vmatprep.subr.mxu0 0.0
        %439 = vmatpush1.msra.mxu0 0.0
        %440 = vmatprep.subr.mxu0 0.0
        %441 = vmatpush1.msra.mxu0 0.0
        %442 = vmatprep.subr.mxu0 0.0
        %443 = vmatpush1.msra.mxu0 0.0
        %444 = vmatprep.subr.mxu0 0.0
        %445 = vmatpush1.msra.mxu0 0.0
        %446 = vmatprep.subr.mxu0 0.0
        %447 = vmatpush1.msra.mxu0 0.0
        %448 = vmatprep.subr.mxu0 0.0
        %449 = vmatpush1.msra.mxu0 0.0
        %450 = vmatprep.subr.mxu0 0.0
        %v451 = vand.u32 %v260, 4294901760
        %v452 = vsub.f32 %v260, %v451
        %453 = vmatpush1.msra.mxu0 %v452
        %454 = vmatprep.subr.mxu0 0.0
        %v455 = vand.u32 %v259, 4294901760
        %v456 = vsub.f32 %v259, %v455
        %457 = vmatpush1.msra.mxu0 %v456
        %458 = vmatprep.subr.mxu0 0.0
        %459 = vmatpush2.msra.mxu0 0.0
        %460 = vmatprep.subr.mxu0 0.0
        %461 = vmatpush2.msra.mxu0 0.0
        %462 = vmatprep.subr.mxu0 0.0
        %463 = vmatpush2.msra.mxu0 0.0
        %464 = vmatprep.subr.mxu0 0.0
        %465 = vmatpush2.msra.mxu0 0.0
        %466 = vmatprep.subr.mxu0 0.0
        %467 = vmatpush2.msra.mxu0 0.0
        %468 = vmatprep.subr.mxu0 0.0
        %469 = vmatpush2.msra.mxu0 0.0
        %470 = vmatprep.subr.mxu0 0.0
        %471 = vmatpush2.msra.mxu0 0.0
        %472 = vmatprep.subr.mxu0 0.0
        %473 = vmatpush2.msra.mxu0 0.0
        %474 = vmatprep.subr.mxu0 0.0
        %475 = vmatpush2.msra.mxu0 0.0
        %476 = vmatprep.subr.mxu0 0.0
        %477 = vmatpush2.msra.mxu0 0.0
        %478 = vmatprep.subr.mxu0 0.0
        %479 = vmatpush2.msra.mxu0 0.0
        %480 = vmatprep.subr.mxu0 0.0
        %481 = vmatpush2.msra.mxu0 0.0
        %482 = vmatprep.subr.mxu0 0.0
        %483 = vmatpush2.msra.mxu0 0.0
        %484 = vmatprep.subr.mxu0 0.0
        %485 = vmatpush2.msra.mxu0 0.0
        %486 = vmatprep.subr.mxu0 0.0
        %487 = vmatpush2.msra.mxu0 0.0
        %488 = vmatprep.subr.mxu0 0.0
        %489 = vmatpush2.msra.mxu0 0.0
        %490 = vmatprep.mubr.f32.mxu0 0.0
        %v491 = vand.u32 %v262, 4294901760
        %v492 = vsub.f32 %v262, %v491
        %493 = vmatmul.mubr.f32.gmra.mxu0 %v492
        %v494 = vpop.f32.mrf.mxu0
        %v495 = vadd.f32 %v419, %v494
        %v496 = vpop.f32.mrf.mxu0
        %497 = vdwg.mxu0
        %498 = vmatprep.subr.mxu0 0.0
        %499 = vmatpush1.msra.mxu0 0.0
        %500 = vmatprep.subr.mxu0 0.0
        %501 = vmatpush1.msra.mxu0 0.0
        %502 = vmatprep.subr.mxu0 0.0
        %503 = vmatpush1.msra.mxu0 0.0
        %504 = vmatprep.subr.mxu0 0.0
        %505 = vmatpush1.msra.mxu0 0.0
        %506 = vmatprep.subr.mxu0 0.0
        %507 = vmatpush1.msra.mxu0 0.0
        %508 = vmatprep.subr.mxu0 0.0
        %509 = vmatpush1.msra.mxu0 0.0
        %510 = vmatprep.subr.mxu0 0.0
        %511 = vmatpush1.msra.mxu0 0.0
        %512 = vmatprep.subr.mxu0 0.0
        %513 = vmatpush1.msra.mxu0 0.0
        %514 = vmatprep.subr.mxu0 0.0
        %515 = vmatpush1.msra.mxu0 0.0
        %516 = vmatprep.subr.mxu0 0.0
        %517 = vmatpush1.msra.mxu0 0.0
        %518 = vmatprep.subr.mxu0 0.0
        %519 = vmatpush1.msra.mxu0 0.0
        %520 = vmatprep.subr.mxu0 0.0
        %521 = vmatpush1.msra.mxu0 0.0
        %522 = vmatprep.subr.mxu0 0.0
        %523 = vmatpush1.msra.mxu0 0.0
        %524 = vmatprep.subr.mxu0 0.0
        %525 = vmatpush1.msra.mxu0 0.0
        %526 = vmatprep.subr.mxu0 0.0
        %v527 = vand.u32 %v260, 4294901760
        %528 = vmatpush1.msra.mxu0 %v527
        %529 = vmatprep.subr.mxu0 0.0
        %v530 = vand.u32 %v259, 4294901760
        %531 = vmatpush1.msra.mxu0 %v530
        %532 = vmatprep.subr.mxu0 0.0
        %533 = vmatpush2.msra.mxu0 0.0
        %534 = vmatprep.subr.mxu0 0.0
        %535 = vmatpush2.msra.mxu0 0.0
        %536 = vmatprep.subr.mxu0 0.0
        %537 = vmatpush2.msra.mxu0 0.0
        %538 = vmatprep.subr.mxu0 0.0
        %539 = vmatpush2.msra.mxu0 0.0
        %540 = vmatprep.subr.mxu0 0.0
        %541 = vmatpush2.msra.mxu0 0.0
        %542 = vmatprep.subr.mxu0 0.0
        %543 = vmatpush2.msra.mxu0 0.0
        %544 = vmatprep.subr.mxu0 0.0
        %545 = vmatpush2.msra.mxu0 0.0
        %546 = vmatprep.subr.mxu0 0.0
        %547 = vmatpush2.msra.mxu0 0.0
        %548 = vmatprep.subr.mxu0 0.0
        %549 = vmatpush2.msra.mxu0 0.0
        %550 = vmatprep.subr.mxu0 0.0
        %551 = vmatpush2.msra.mxu0 0.0
        %552 = vmatprep.subr.mxu0 0.0
        %553 = vmatpush2.msra.mxu0 0.0
        %554 = vmatprep.subr.mxu0 0.0
        %555 = vmatpush2.msra.mxu0 0.0
        %556 = vmatprep.subr.mxu0 0.0
        %557 = vmatpush2.msra.mxu0 0.0
        %558 = vmatprep.subr.mxu0 0.0
        %559 = vmatpush2.msra.mxu0 0.0
        %560 = vmatprep.subr.mxu0 0.0
        %561 = vmatpush2.msra.mxu0 0.0
        %562 = vmatprep.subr.mxu0 0.0
        %563 = vmatpush2.msra.mxu0 0.0
        %564 = vmatprep.mubr.f32.mxu0 0.0
        %v565 = vand.u32 %v262, 4294901760
        %v566 = vsub.f32 %v262, %v565
        %v567 = vand.u32 %v566, 4294901760
        %568 = vmatmul.mubr.f32.gmra.mxu0 %v567
        %v569 = vpop.f32.mrf.mxu0
        %v570 = vadd.f32 %v495, %v569
        %v571 = vpop.f32.mrf.mxu0
        %572 = vdwg.mxu0
        %573 = vmatprep.subr.mxu0 0.0
        %574 = vmatpush1.msra.mxu0 0.0
        %575 = vmatprep.subr.mxu0 0.0
        %576 = vmatpush1.msra.mxu0 0.0
        %577 = vmatprep.subr.mxu0 0.0
        %578 = vmatpush1.msra.mxu0 0.0
        %579 = vmatprep.subr.mxu0 0.0
        %580 = vmatpush1.msra.mxu0 0.0
        %581 = vmatprep.subr.mxu0 0.0
        %582 = vmatpush1.msra.mxu0 0.0
        %583 = vmatprep.subr.mxu0 0.0
        %584 = vmatpush1.msra.mxu0 0.0
        %585 = vmatprep.subr.mxu0 0.0
        %586 = vmatpush1.msra.mxu0 0.0
        %587 = vmatprep.subr.mxu0 0.0
        %588 = vmatpush1.msra.mxu0 0.0
        %589 = vmatprep.subr.mxu0 0.0
        %590 = vmatpush1.msra.mxu0 0.0
        %591 = vmatprep.subr.mxu0 0.0
        %592 = vmatpush1.msra.mxu0 0.0
        %593 = vmatprep.subr.mxu0 0.0
        %594 = vmatpush1.msra.mxu0 0.0
        %595 = vmatprep.subr.mxu0 0.0
        %596 = vmatpush1.msra.mxu0 0.0
        %597 = vmatprep.subr.mxu0 0.0
        %598 = vmatpush1.msra.mxu0 0.0
        %599 = vmatprep.subr.mxu0 0.0
        %600 = vmatpush1.msra.mxu0 0.0
        %601 = vmatprep.subr.mxu0 0.0
        %v602 = vand.u32 %v260, 4294901760
        %v603 = vsub.f32 %v260, %v602
        %v604 = vand.u32 %v603, 4294901760
        %605 = vmatpush1.msra.mxu0 %v604
        %606 = vmatprep.subr.mxu0 0.0
        %v607 = vand.u32 %v259, 4294901760
        %v608 = vsub.f32 %v259, %v607
        %v609 = vand.u32 %v608, 4294901760
        %610 = vmatpush1.msra.mxu0 %v609
        %611 = vmatprep.subr.mxu0 0.0
        %612 = vmatpush2.msra.mxu0 0.0
        %613 = vmatprep.subr.mxu0 0.0
        %614 = vmatpush2.msra.mxu0 0.0
        %615 = vmatprep.subr.mxu0 0.0
        %616 = vmatpush2.msra.mxu0 0.0
        %617 = vmatprep.subr.mxu0 0.0
        %618 = vmatpush2.msra.mxu0 0.0
        %619 = vmatprep.subr.mxu0 0.0
        %620 = vmatpush2.msra.mxu0 0.0
        %621 = vmatprep.subr.mxu0 0.0
        %622 = vmatpush2.msra.mxu0 0.0
        %623 = vmatprep.subr.mxu0 0.0
        %624 = vmatpush2.msra.mxu0 0.0
        %625 = vmatprep.subr.mxu0 0.0
        %626 = vmatpush2.msra.mxu0 0.0
        %627 = vmatprep.subr.mxu0 0.0
        %628 = vmatpush2.msra.mxu0 0.0
        %629 = vmatprep.subr.mxu0 0.0
        %630 = vmatpush2.msra.mxu0 0.0
        %631 = vmatprep.subr.mxu0 0.0
        %632 = vmatpush2.msra.mxu0 0.0
        %633 = vmatprep.subr.mxu0 0.0
        %634 = vmatpush2.msra.mxu0 0.0
        %635 = vmatprep.subr.mxu0 0.0
        %636 = vmatpush2.msra.mxu0 0.0
        %637 = vmatprep.subr.mxu0 0.0
        %638 = vmatpush2.msra.mxu0 0.0
        %639 = vmatprep.subr.mxu0 0.0
        %640 = vmatpush2.msra.mxu0 0.0
        %641 = vmatprep.subr.mxu0 0.0
        %642 = vmatpush2.msra.mxu0 0.0
        %643 = vmatprep.mubr.f32.mxu0 0.0
        %v644 = vand.u32 %v262, 4294901760
        %645 = vmatmul.mubr.f32.gmra.mxu0 %v644
        %v646 = vpop.f32.mrf.mxu0
        %v647 = vadd.f32 %v570, %v646
        %v648 = vpop.f32.mrf.mxu0
        %649 = vdwg.mxu0
        %650 = vmatprep.subr.mxu0 0.0
        %651 = vmatpush1.msra.mxu0 0.0
        %652 = vmatprep.subr.mxu0 0.0
        %653 = vmatpush1.msra.mxu0 0.0
        %654 = vmatprep.subr.mxu0 0.0
        %655 = vmatpush1.msra.mxu0 0.0
        %656 = vmatprep.subr.mxu0 0.0
        %657 = vmatpush1.msra.mxu0 0.0
        %658 = vmatprep.subr.mxu0 0.0
        %659 = vmatpush1.msra.mxu0 0.0
        %660 = vmatprep.subr.mxu0 0.0
        %661 = vmatpush1.msra.mxu0 0.0
        %662 = vmatprep.subr.mxu0 0.0
        %663 = vmatpush1.msra.mxu0 0.0
        %664 = vmatprep.subr.mxu0 0.0
        %665 = vmatpush1.msra.mxu0 0.0
        %666 = vmatprep.subr.mxu0 0.0
        %667 = vmatpush1.msra.mxu0 0.0
        %668 = vmatprep.subr.mxu0 0.0
        %669 = vmatpush1.msra.mxu0 0.0
        %670 = vmatprep.subr.mxu0 0.0
        %671 = vmatpush1.msra.mxu0 0.0
        %672 = vmatprep.subr.mxu0 0.0
        %673 = vmatpush1.msra.mxu0 0.0
        %674 = vmatprep.subr.mxu0 0.0
        %675 = vmatpush1.msra.mxu0 0.0
        %676 = vmatprep.subr.mxu0 0.0
        %677 = vmatpush1.msra.mxu0 0.0
        %678 = vmatprep.subr.mxu0 0.0
        %v679 = vand.u32 %v260, 4294901760
        %680 = vmatpush1.msra.mxu0 %v679
        %681 = vmatprep.subr.mxu0 0.0
        %v682 = vand.u32 %v259, 4294901760
        %683 = vmatpush1.msra.mxu0 %v682
        %684 = vmatprep.subr.mxu0 0.0
        %685 = vmatpush2.msra.mxu0 0.0
        %686 = vmatprep.subr.mxu0 0.0
        %687 = vmatpush2.msra.mxu0 0.0
        %688 = vmatprep.subr.mxu0 0.0
        %689 = vmatpush2.msra.mxu0 0.0
        %690 = vmatprep.subr.mxu0 0.0
        %691 = vmatpush2.msra.mxu0 0.0
        %692 = vmatprep.subr.mxu0 0.0
        %693 = vmatpush2.msra.mxu0 0.0
        %694 = vmatprep.subr.mxu0 0.0
        %695 = vmatpush2.msra.mxu0 0.0
        %696 = vmatprep.subr.mxu0 0.0
        %697 = vmatpush2.msra.mxu0 0.0
        %698 = vmatprep.subr.mxu0 0.0
        %699 = vmatpush2.msra.mxu0 0.0
        %700 = vmatprep.subr.mxu0 0.0
        %701 = vmatpush2.msra.mxu0 0.0
        %702 = vmatprep.subr.mxu0 0.0
        %703 = vmatpush2.msra.mxu0 0.0
        %704 = vmatprep.subr.mxu0 0.0
        %705 = vmatpush2.msra.mxu0 0.0
        %706 = vmatprep.subr.mxu0 0.0
        %707 = vmatpush2.msra.mxu0 0.0
        %708 = vmatprep.subr.mxu0 0.0
        %709 = vmatpush2.msra.mxu0 0.0
        %710 = vmatprep.subr.mxu0 0.0
        %711 = vmatpush2.msra.mxu0 0.0
        %712 = vmatprep.subr.mxu0 0.0
        %713 = vmatpush2.msra.mxu0 0.0
        %714 = vmatprep.subr.mxu0 0.0
        %715 = vmatpush2.msra.mxu0 0.0
        %716 = vmatprep.mubr.f32.mxu0 0.0
        %v717 = vand.u32 %v262, 4294901760
        %718 = vmatmul.mubr.f32.gmra.mxu0 %v717
        %v719 = vpop.f32.mrf.mxu0
        %v720 = vadd.f32 %v647, %v719
        %v721 = vpop.f32.mrf.mxu0
        %722 = vdwg.mxu0
        %vm723 = vcmask 15360
        %v724 = vsel %vm723, %v720, 0.0
        %725 = vadd.xlane.f32.xlu0 %v724
        %v726 = vpop.xlane.xlu0 %725
        %v727 = vld [vmem:[#allocation3] sm:$0xff]
        %v728 = vsub.f32 %v249, %v250
        %v729 = vmul.f32 %v728, 1.442695
        %v730 = vpow.pop %v729
        %v731 = vmul.f32 %v727, %v730
        %v732 = vadd.f32 %v731, %v726
        %vm733 = vcmask 7168
        %734 = vst.msk [vmem:[#allocation3] sm:$0xff] %vm733, %v732
        %735 = vst.msk [vmem:[#allocation2] sm:$0xff] %vm733, %v250
        %v736 = vlog2.pop %v720
        %v737 = vmul.f32 %v736, 0.6931472
        %v738 = vadd.f32 %v254, %v737
        %v739 = vlaneseq
        %v740 = vshrl.u32 %v739, 7
        %v741 = vlaneseq
        %v742 = vand.u32 %v741, 127
        %s743 = smul.u32 %s14, 2
        %v744 = vstv %s743
        %v745 = vadd.s32 %v742, %v744
        %vm746 = vcmp.eq.s32.totalorder %v740, %v745
        %v747 = vsel %vm723, %v738, -inf
        %v748 = vrot.slane %v747, 4
        %v749 = vmax.f32 %v747, %v748
        %v750 = vrot.slane %v749, 2
        %v751 = vmax.f32 %v749, %v750
        %v752 = vrot.slane %v751, 1
        %v753 = vmax.f32 %v751, %v752
        %vm754 = vcmp.eq.f32.partialorder %v753, -inf
        %v755 = vsel %vm754, 0.0, %v753
        %v756 = vsub.f32 %v738, %v755
        %v757 = vmul.f32 %v756, 1.442695
        %v758 = vpow.pop %v757
        %v759 = vsel %vm723, %v758, 0.0
        %v760 = vrot.slane %v759, 4
        %v761 = vadd.f32 %v759, %v760
        %v762 = vrot.slane %v761, 2
        %v763 = vadd.f32 %v761, %v762
        %v764 = vrot.slane %v763, 1
        %v765 = vadd.f32 %v763, %v764
        %v766 = vlog2.pop %v765
        %v767 = vmul.f32 %v766, 0.6931472
        %v768 = vadd.f32 %v755, %v767
        %v769 = vld [vmem:[#allocation4] sm:$0xff]
        %v770 = vsel %vm746, %v768, 0.0
        %v771 = vsel %vm723, %v770, 0.0
        %772 = vadd.xlane.f32.xlu0 %v771
        %v773 = vpop.xlane.xlu0 %772
        %v774 = vadd.f32 %v769, %v773
        %775 = vst.msk [vmem:[#allocation4] sm:$0xff] %vm733, %v774
        %v776 = vld [vmem:[#allocation5] sm:$0xff]
        %v777 = vsel %vm746, %v738, 0.0
        %v778 = vsel %vm723, %v777, 0.0
        %779 = vadd.xlane.f32.xlu0 %v778
        %v780 = vpop.xlane.xlu0 %779
        %v781 = vadd.f32 %v776, %v780
        %782 = vst.msk [vmem:[#allocation5] sm:$0xff] %vm733, %v781
        %p783 = scmp.eq.s32.totalorder %s14, 3
        // Predicated region
        $region33: #{tpu_custom_call.1} parent=27 // pred_check
          %p784 = pneg %p783
        $region34: #{tpu_custom_call.1} parent=27 // pred_check_branch
          %786 = sbr.rel (%p784) target = $region36
        $region35: #{tpu_custom_call.1} parent=27 // pred_region
          %v787 = vld [vmem:[#allocation2] sm:$0xff]
          %v788 = vld [vmem:[#allocation3] sm:$0xff]
          %v789 = vlog2.pop %v788
          %v790 = vmul.f32 %v789, 0.6931472
          %v791 = vadd.f32 %v787, %v790
          %v792 = vld [vmem:[#allocation4] sm:$0xff]
          %v793 = vmax.f32 %v791, %v792
          %v794 = vsub.f32 %v791, %v793
          %v795 = vmul.f32 %v794, 1.442695
          %v796 = vpow.pop %v795
          %v797 = vsub.f32 %v792, %v793
          %v798 = vmul.f32 %v797, 1.442695
          %v799 = vpow.pop %v798
          %v800 = vadd.f32 %v796, %v799
          %v801 = vlog2.pop %v800
          %v802 = vmul.f32 %v801, 0.6931472
          %v803 = vadd.f32 %v793, %v802
          %v804 = vld [vmem:[#allocation5] sm:$0xff]
          %v805 = vsub.f32 %v803, %v804
          %v806 = vsel %vm733, %v805, 0.0
          %807 = vadd.xlane.f32.xlu0 %v806
          %v808 = vpop.xlane.xlu0 %807
          %v809 = vrot.slane %v808, 4
          %v810 = vadd.f32 %v808, %v809
          %v811 = vrot.slane %v810, 2
          %v812 = vadd.f32 %v810, %v811
          %v813 = vrot.slane %v812, 1
          %v814 = vadd.f32 %v812, %v813
          %s815 = vtos %v814
          %v816 = vstv %s815
          %v817 = vrcp.pop 8.0
          %v818 = vmul.f32 %v816, %v817
          %vm819 = vcmask 0
          %820 = vst.msk [vmem:[#allocation7] sm:$0x1] %vm819, %v818
        $region36: #{tpu_custom_call.1} parent=27 // pred_fallthru
          _
        // Predicated region
        $region37: #{tpu_custom_call.1} parent=27 // pred_check
          %p821 = pneg %p74
        $region38: #{tpu_custom_call.1} parent=27 // pred_check_branch
          %823 = sbr.rel (%p821) target = $region40
        $region39: #{tpu_custom_call.1} parent=27 // pred_region
          %s825 = ssub.s32 16, 16
          %826 = vsyncadd [#allocation8], %s825
          %s828 = sshll.u32 [#allocation7], 4
          %s829 = int_to_ptr.vmem [resolvable:$true] %s828
          %831 = dma.vmem_to_hbm [thread:$0]  %s829, 16, %s2, [#allocation8]
        $region40: #{tpu_custom_call.1} parent=27 // pred_fallthru
          _
        // Predicated region
        $region41: #{tpu_custom_call.1} parent=27 // pred_check
          %p832 = pneg %p74
        $region42: #{tpu_custom_call.1} parent=27 // pred_check_branch
          %834 = sbr.rel (%p832) target = $region44
        $region43: #{tpu_custom_call.1} parent=27 // pred_region
          %835 = dma.done [#allocation8], 16
        $region44: #{tpu_custom_call.1} parent=27 // pred_fallthru
          _
      $region28: #{tpu_custom_call.1} parent=5 // pred_fallthru
        _
      %p836 = scmp.le.s32.totalorder 2, %s9
      // Predicated region
      $region45: #{tpu_custom_call.1} parent=5 // pred_check
        %p837 = pneg %p836
      $region46: #{tpu_custom_call.1} parent=5 // pred_check_branch
        %839 = sbr.rel (%p837) target = $region48
      $region47: #{tpu_custom_call.1} parent=5 // pred_region
        %s840 = ssub.s32 %s9, 2
      $region48: #{tpu_custom_call.1} parent=5 // pred_fallthru
        _
    $region6: #{tpu_custom_call.1} parent=1 // loop_footer
      %s13 = sadd.s32 1, %s9
    $region7: #{tpu_custom_call.1} parent=1 // loop_footer_branch
      %8 = sbr.rel target = $region3
    $region8: #{tpu_custom_call.1} parent=1 // loop_exit
      _
    %841 = vsyncpa [#allocation8], 1
    %s842 = scalar_lea.sflag [#allocation8], 1
    %843 = vsyncpa %s842, 1

</llo_original>
